<compile_context>
chip_gen: v5e
topology: v5e:2x2
jax: 0.10.0
libtpu: 0.0.40
codegen_flags: <defaults>
</compile_context>

<pallas_src>
import functools

import jax
import jax.numpy as jnp
from jax.experimental import pallas as pl
from jax.experimental.pallas import tpu as pltpu


def _adain_kernel(x_ref, gb_ref, o_ref, *, rt, eps):
    """One block of rows; each row is one (batch, channel) instance.

    x_ref:  (rt, HW)     flattened spatial (HW == full spatial extent)
    gb_ref: (R_pad, 2)   resident gamma/beta table: [:, 0]=gamma, [:, 1]=beta
    o_ref:  (rt, HW)
    """
    x = x_ref[...].astype(jnp.float32)                      # (rt, HW)
    hw = x.shape[-1]

    # Rows of the resident gamma/beta table owned by this grid step.
    start = pl.multiple_of(pl.program_id(0) * rt, rt)
    gb = gb_ref[pl.ds(start, rt), :].astype(jnp.float32)    # (rt, 2)
    gamma = gb[:, 0:1]                                      # (rt, 1)
    beta = gb[:, 1:2]                                       # (rt, 1)

    # Fused single-pass statistics: mean and E[x^2] together.
    inv_n = jnp.float32(1.0 / hw)
    s = jnp.sum(x, axis=-1, keepdims=True)                  # (rt, 1)
    ss = jnp.sum(x * x, axis=-1, keepdims=True)             # (rt, 1)
    mean = s * inv_n
    var = jnp.maximum(ss * inv_n - mean * mean, 0.0)        # biased, clamped

    inv_std = jax.lax.rsqrt(var + jnp.float32(eps))         # (rt, 1), EUP
    scale = gamma * inv_std
    shift = beta - mean * scale

    # Single fused per-element multiply-add over the whole tile.
    o_ref[...] = (x * scale + shift).astype(o_ref.dtype)


def _pick_row_tile(num_rows, hw, itemsize, target_bytes=4 << 20):
    """Row tile: dtype-aware sublane multiple, ~target_bytes block, and at
    least two grid steps when the row count allows it (v7x dual-TC)."""
    sub = max(8, 32 // itemsize)           # f32: 8, bf16: 16, int8/fp8: 32
    if num_rows <= sub:
        return int(num_rows)               # single full-dim block
    per_row = max(hw * itemsize, 1)
    rt = max(sub, (target_bytes // per_row) // sub * sub)
    # Ensure >= 2 grid iterations so the parallel axis can shard across
    # both TensorCores on v7x.
    half = -(-((num_rows + 1) // 2) // sub) * sub
    rt = min(rt, half)
    # Never exceed the (sublane-rounded) row count.
    rt = min(rt, -(-num_rows // sub) * sub)
    return int(rt)


def adaptive_instance_norm_2d(x, y, wg, wb, eps=1e-9):
    """
    x:  (B, C, H, W)   feature maps (NCHW, like PyTorch)
    y:  (B, S)         style vectors
    wg: (C, S)         gamma_transform.weight  (PyTorch Linear layout)
    wb: (C, S)         beta_transform.weight
    """
    B, C, H, W = x.shape
    HW = H * W
    R = B * C

    # Hoisted style projections: tiny XLA matmuls outside the kernel.
    gamma = jnp.dot(y.astype(jnp.float32), wg.astype(jnp.float32).T)  # (B, C)
    beta = jnp.dot(y.astype(jnp.float32), wb.astype(jnp.float32).T)   # (B, C)

    rt = _pick_row_tile(R, HW, x.dtype.itemsize)
    n_blocks = pl.cdiv(R, rt)
    r_pad = n_blocks * rt

    # Packed, VMEM-resident gamma/beta table (padded so per-block slices of
    # the resident buffer never go out of bounds).
    gb = jnp.stack([gamma.reshape(R), beta.reshape(R)], axis=-1)      # (R, 2)
    if r_pad != R:
        gb = jnp.pad(gb, ((0, r_pad - R), (0, 0)))

    x_rows = x.reshape(R, HW)   # free view: NCHW is contiguous over (H, W)

    # VMEM budget: double-buffered in + out blocks (+ resident gamma/beta).
    block_bytes = rt * HW * x.dtype.itemsize
    vmem_limit = int(min(100 * 1024 * 1024,
                         max(32 * 1024 * 1024,
                             4 * block_bytes + r_pad * 8 + (2 << 20))))

    kernel = functools.partial(_adain_kernel, rt=rt, eps=eps)

    out_rows = pl.pallas_call(
        kernel,
        out_shape=jax.ShapeDtypeStruct((R, HW), x.dtype),
        grid_spec=pltpu.PrefetchScalarGridSpec(
            num_scalar_prefetch=0,
            grid=(n_blocks,),
            in_specs=[
                pl.BlockSpec((rt, HW), lambda r: (r, 0)),       # streamed x rows
                pl.BlockSpec((r_pad, 2), lambda r: (0, 0)),     # resident gamma/beta
            ],
            out_specs=pl.BlockSpec((rt, HW), lambda r: (r, 0)),
        ),
        compiler_params=pltpu.CompilerParams(
            dimension_semantics=("parallel",),
            vmem_limit_bytes=vmem_limit,
        ),
    )(x_rows, gb)

    return out_rows.reshape(B, C, H, W)


def reference_adain(x, y, wg, wb, eps=1e-9):
    gamma = y @ wg.T                    # (B, C)
    beta = y @ wb.T                     # (B, C)
    mean = x.mean(axis=(2, 3), keepdims=True)
    var = ((x - mean) ** 2).mean(axis=(2, 3), keepdims=True)
    out = (x - mean) / jnp.sqrt(var + eps)
    return out * gamma[:, :, None, None] + beta[:, :, None, None]


if __name__ == "__main__":
    B, C, H, W = 2, 4, 16, 16
    style_dim = 8
    eps = 1e-9

    key = jax.random.PRNGKey(0)
    kx, ky, kg, kb = jax.random.split(key, 4)

    x = jax.random.normal(kx, (B, C, H, W), dtype=jnp.float32)
    y = jax.random.normal(ky, (B, style_dim), dtype=jnp.float32)

    # Deterministic Linear weights (PyTorch layout (C, S), no bias).
    bound = 1.0 / (style_dim ** 0.5)
    wg = jax.random.uniform(kg, (C, style_dim), jnp.float32, -bound, bound)
    wb = jax.random.uniform(kb, (C, style_dim), jnp.float32, -bound, bound)

    out = adaptive_instance_norm_2d(x, y, wg, wb, eps=eps)
    out = jax.block_until_ready(out)

    ref = reference_adain(x, y, wg, wb, eps=eps)
    assert out.shape == (B, C, H, W)
    assert jnp.allclose(out, ref, atol=1e-4, rtol=1e-4), "mismatch vs reference"

    print("KERNEL_OK")
</pallas_src>

<mosaic_0001>
module attributes {stable_mosaic.version = 11 : i64} {
  func.func @_adain_kernel(%arg0: i32, %arg1: memref<8x256xf32, #tpu.memory_space<vmem>>, %arg2: memref<8x2xf32, #tpu.memory_space<vmem>>, %arg3: memref<8x256xf32, #tpu.memory_space<vmem>>) attributes {dimension_semantics = [#tpu.dimension_semantics<parallel>], iteration_bounds = array<i64: 1>, scalar_prefetch = 0 : i64, scratch_operands = 0 : i64, tpu.core_type = #tpu.core_type<tc>, window_params = [{transform_indices = @transform_0, window_bounds = array<i64: 8, 256>}, {pipeline_mode = #tpu.pipeline_mode<synchronous>, transform_indices = @transform_1, window_bounds = array<i64: 8, 2>}, {transform_indices = @transform_2, window_bounds = array<i64: 8, 256>}]} {
    %c0 = arith.constant 0 : index
    %c0_0 = arith.constant 0 : index
    %0 = vector.load %arg1[%c0, %c0_0] : memref<8x256xf32, #tpu.memory_space<vmem>>, vector<8x256xf32>
    %c8_i32 = arith.constant 8 : i32
    %1 = arith.muli %arg0, %c8_i32 : i32
    %2 = tpu.assume_multiple %1, 8 : i32
    %3 = arith.index_cast %2 : i32 to index
    %c0_1 = arith.constant 0 : index
    %4 = vector.load %arg2[%3, %c0_1] : memref<8x2xf32, #tpu.memory_space<vmem>>, vector<8x2xf32>
    %5 = vector.extract_strided_slice %4 {offsets = [0, 0], sizes = [8, 1], strides = [1, 1]} : vector<8x2xf32> to vector<8x1xf32>
    %6 = vector.extract_strided_slice %4 {offsets = [0, 1], sizes = [8, 1], strides = [1, 1]} : vector<8x2xf32> to vector<8x1xf32>
    %cst = arith.constant dense<0.000000e+00> : vector<8xf32>
    %7 = vector.multi_reduction <add>, %0, %cst [1] : vector<8x256xf32> to vector<8xf32>
    %8 = vector.shape_cast %7 : vector<8xf32> to vector<8x1xf32>
    %9 = arith.mulf %0, %0 : vector<8x256xf32>
    %cst_2 = arith.constant dense<0.000000e+00> : vector<8xf32>
    %10 = vector.multi_reduction <add>, %9, %cst_2 [1] : vector<8x256xf32> to vector<8xf32>
    %11 = vector.shape_cast %10 : vector<8xf32> to vector<8x1xf32>
    %cst_3 = arith.constant 3.906250e-03 : f32
    %12 = vector.broadcast %cst_3 : f32 to vector<8x1xf32>
    %13 = arith.mulf %8, %12 : vector<8x1xf32>
    %cst_4 = arith.constant 3.906250e-03 : f32
    %14 = vector.broadcast %cst_4 : f32 to vector<8x1xf32>
    %15 = arith.mulf %11, %14 : vector<8x1xf32>
    %16 = arith.mulf %13, %13 : vector<8x1xf32>
    %17 = arith.subf %15, %16 : vector<8x1xf32>
    %cst_5 = arith.constant 0.000000e+00 : f32
    %18 = vector.broadcast %cst_5 : f32 to vector<8x1xf32>
    %19 = arith.maximumf %17, %18 : vector<8x1xf32>
    %cst_6 = arith.constant 9.99999971E-10 : f32
    %20 = vector.broadcast %cst_6 : f32 to vector<8x1xf32>
    %21 = arith.addf %19, %20 : vector<8x1xf32>
    %22 = math.rsqrt %21 : vector<8x1xf32>
    %23 = arith.mulf %5, %22 : vector<8x1xf32>
    %24 = arith.mulf %13, %23 : vector<8x1xf32>
    %25 = arith.subf %6, %24 : vector<8x1xf32>
    %26 = vector.broadcast %23 : vector<8x1xf32> to vector<8x256xf32>
    %27 = arith.mulf %0, %26 : vector<8x256xf32>
    %28 = vector.broadcast %25 : vector<8x1xf32> to vector<8x256xf32>
    %29 = arith.addf %27, %28 : vector<8x256xf32>
    %c0_7 = arith.constant 0 : index
    %c0_8 = arith.constant 0 : index
    %30 = vector.load %arg3[%c0_7, %c0_8] : memref<8x256xf32, #tpu.memory_space<vmem>>, vector<8x256xf32>
    tpu.vector_store %arg3[%c0_7, %c0_8], %29 {strides = array<i32>} : memref<8x256xf32, #tpu.memory_space<vmem>>, vector<8x256xf32>,
    return
  }
  func.func @transform_0(%arg0: i32) -> (i32, i32) {
    %c0_i32 = arith.constant 0 : i32
    %c0_i32_0 = arith.constant 0 : i32
    return %arg0, %c0_i32 : i32, i32
  }
  func.func @transform_1(%arg0: i32) -> (i32, i32) {
    %c0_i32 = arith.constant 0 : i32
    %c0_i32_0 = arith.constant 0 : i32
    %c0_i32_1 = arith.constant 0 : i32
    return %c0_i32, %c0_i32_0 : i32, i32
  }
  func.func @transform_2(%arg0: i32) -> (i32, i32) {
    %c0_i32 = arith.constant 0 : i32
    %c0_i32_0 = arith.constant 0 : i32
    return %arg0, %c0_i32 : i32, i32
  }
}

</mosaic_0001>

<llo_original>
// kernel: tpu_custom_call.1
$region0: #{tpu_custom_call.1}
  #allocation0 [shape = 'u32[]', space=smem, size = 0x4, offset = 0x4, fixed_abs, tag = 'smem constant byte address 0x4 - core index']
  #allocation1 [shape = 'u32[72,128]{1,0:T(1,128)}', space=vmem, size = 0x9000, scoped, tag = 'internal scratch']
  %s0 = inlined_call_operand.hbm [shape: f32[8,256], index: 0, kind: input, shape index: {}]
  %s1 = inlined_call_operand.vmem [shape: f32[8,2], index: 1, kind: input, shape index: {}]
  %s2 = inlined_call_operand.hbm [shape: f32[8,256], index: 2, kind: output, shape index: {}]
  %s3 = sld [smem:[#allocation0]]
  $region22: #{tpu_custom_call.1} parent=0
    _
  %s5 = ssub.s32 1, %s3
  %s6 = scalar_select 0, %s5, %s3
  $region1: #{tpu_custom_call.1} parent=0
    #allocation2 [shape = 'u8[8192]{0}', space=vmem, size = 0x2000, scoped, tag = 'input window, operand 0, single buffered']
    #allocation3 [shape = 's32[1]{0}', space=sflag, size = 0x4, scoped, tag = 'scoped memory for tpu_custom_call.1']
    #allocation4 [shape = 's32[1]{0}', space=sflag, size = 0x4, scoped, tag = 'scoped memory for tpu_custom_call.1']
    #allocation5 [shape = 'u8[8192]{0}', space=vmem, size = 0x2000, scoped, tag = 'output window, operand 0, single buffered']
    %7 = vsyncpa [#allocation3], 0
    %8 = vsyncpa [#allocation4], 0
    // Predicated region
    $region2: #{tpu_custom_call.1} parent=1 // pred_check
      _
    $region3: #{tpu_custom_call.1} parent=1 // pred_check_branch
      %10 = sbr.rel (0) target = $region5
    $region4: #{tpu_custom_call.1} parent=1 // pred_region
      %12 = vsyncadd [#allocation3], 0
      %s14 = sshll.u32 %s0, 4
      %s15 = int_to_ptr.hbm [resolvable:$true] %s14
      %s16 = sshll.u32 [#allocation2], 4
      %s17 = int_to_ptr.vmem [resolvable:$true] %s16
      %19 = dma.hbm_to_vmem [thread:$0]  %s15, 256, %s17, [#allocation3]
    $region5: #{tpu_custom_call.1} parent=1 // pred_fallthru
      _
    // Predicated region
    $region6: #{tpu_custom_call.1} parent=1 // pred_check
      _
    $region7: #{tpu_custom_call.1} parent=1 // pred_check_branch
      %21 = sbr.rel (0) target = $region9
    $region8: #{tpu_custom_call.1} parent=1 // pred_region
      _
    $region9: #{tpu_custom_call.1} parent=1 // pred_fallthru
      _
    // Predicated region
    $region10: #{tpu_custom_call.1} parent=1 // pred_check
      _
    $region11: #{tpu_custom_call.1} parent=1 // pred_check_branch
      %23 = sbr.rel (0) target = $region13
    $region12: #{tpu_custom_call.1} parent=1 // pred_region
      %25 = dma.done [#allocation3], 256
    $region13: #{tpu_custom_call.1} parent=1 // pred_fallthru
      _
    %v26 = vld [vmem:[#allocation2] sm:$0xff]
    %v27 = vld [vmem:[#allocation2 + $0x8] sm:$0xff]
    %s28 = smul.u32 0, 8
    %s29 = scalar_lea.vmem %s1, %s28
    %v30 = vld [vmem:[%s29] sm:$0xff]
    %v31 = vadd.f32 %v26, %v27
    %32 = vadd.xlane.f32.xlu0 %v31
    %v33 = vpop.xlane.xlu0 %32
    %v34 = vmul.f32 %v26, %v26
    %v35 = vmul.f32 %v27, %v27
    %v36 = vadd.f32 %v34, %v35
    %37 = vadd.xlane.f32.xlu0 %v36
    %v38 = vpop.xlane.xlu0 %37
    %v39 = vmul.f32 %v33, 0.00390625
    %v40 = vmul.f32 %v38, 0.00390625
    %v41 = vmul.f32 %v39, %v39
    %v42 = vsub.f32 %v40, %v41
    %v43 = vmax.f32 %v42, 0.0
    %v44 = vadd.f32 %v43, 1e-09
    %v45 = vrsqrt.pop %v44
    %v46 = vmul.f32 %v45, %v44
    %v47 = vmul.f32 %v46, %v45
    %v48 = vmul.f32 0.5, %v47
    %v49 = vsub.f32 1.5, %v48
    %v50 = vmul.f32 %v45, %v49
    %vm51 = vweird.f32 %v44
    %vm52 = vweird.f32 %v45
    %vm53 = vmor %vm51, %vm52
    %v54 = vsel %vm53, %v45, %v50
    %v55 = vmul.f32 %v30, %v54
    %v56 = vmul.f32 %v39, %v55
    %58 = vrot.lane.b32.xlu0 %v56, 1
    %v59 = vpop.permute.xlu0 %58
    %v61 = vsub.f32 %v30, %v59
    %63 = vset.pattern.permute.xlu0 0
    %64 = vperm.xlu0 %63, %v55
    %v65 = vpop.permute.xlu0 %64
    %v67 = vmul.f32 %v26, %v65
    %v68 = vmul.f32 %v27, %v65
    %70 = vset.pattern.permute.xlu0 1
    %71 = vperm.xlu0 %70, %v61
    %v72 = vpop.permute.xlu0 %71
    %v74 = vadd.f32 %v67, %v72
    %v75 = vadd.f32 %v68, %v72
    %76 = vst [vmem:[#allocation5] sm:$0xff] %v74
    %77 = vst [vmem:[#allocation5 + $0x8] sm:$0xff] %v75
    // Predicated region
    $region14: #{tpu_custom_call.1} parent=1 // pred_check
      _
    $region15: #{tpu_custom_call.1} parent=1 // pred_check_branch
      %79 = sbr.rel (0) target = $region17
    $region16: #{tpu_custom_call.1} parent=1 // pred_region
      %81 = vsyncadd [#allocation4], 0
      %s83 = sshll.u32 [#allocation5], 4
      %s84 = int_to_ptr.vmem [resolvable:$true] %s83
      %s85 = sshll.u32 %s2, 4
      %s86 = int_to_ptr.hbm [resolvable:$true] %s85
      %88 = dma.vmem_to_hbm [thread:$0]  %s84, 256, %s86, [#allocation4]
    $region17: #{tpu_custom_call.1} parent=1 // pred_fallthru
      _
    // Predicated region
    $region18: #{tpu_custom_call.1} parent=1 // pred_check
      _
    $region19: #{tpu_custom_call.1} parent=1 // pred_check_branch
      %90 = sbr.rel (0) target = $region21
    $region20: #{tpu_custom_call.1} parent=1 // pred_region
      %92 = dma.done [#allocation4], 256
    $region21: #{tpu_custom_call.1} parent=1 // pred_fallthru
      _
    %93 = vsyncpa [#allocation3], 1
    %94 = vsyncpa [#allocation4], 1

</llo_original>
